<compile_context>
chip_gen: v7x
topology: tpu7x:2x2x1
jax: 0.10.0
libtpu: 0.0.40
codegen_flags: <defaults>
</compile_context>

<pallas_src>
import math

import jax
import jax.numpy as jnp
from jax.experimental import pallas as pl
from jax.experimental.pallas import tpu as pltpu


def _round_up(x, m):
    return (x + m - 1) // m * m


def _vmem_budget_bytes():
    """Generation-aware VMEM scoped limit (leave ~25% headroom)."""
    cap = 64 * 1024 * 1024  # conservative default = v7x per-TC VMEM
    try:
        info = pltpu.get_tpu_info()
        cap = int(getattr(info, "vmem_capacity_bytes", cap))
    except Exception:
        pass
    return min(cap * 3 // 4, 100 * 1024 * 1024)


def _select_tiles(n_pad, alloc_bytes, footprint):
    """Largest (tm, tk) dividing n_pad whose per-step footprint fits."""
    for tm in (1024, 512, 256, 128):
        if n_pad % tm:
            continue
        for tk in (2048, 1024, 512, 256, 128):
            if n_pad % tk:
                continue
            if footprint(tm, tk) <= alloc_bytes:
                return tm, tk
    return 128, 128


def _gcn_fused_kernel(adj_ref, x_ref, w_ref, o_ref):
    """o[i,:] = relu( sum_k adj[i,k-block] @ (x[k-block] @ W) )."""
    k = pl.program_id(1)

    @pl.when(k == 0)
    def _():
        o_ref[...] = jnp.zeros_like(o_ref)

    # Support tile recomputed on the fly; MXU has slack in this HBM-bound
    # kernel so the extra (tk, K) x (K, F_pad) matmul is free.
    sup = jnp.dot(
        x_ref[...].astype(jnp.bfloat16), w_ref[...],
        preferred_element_type=jnp.float32,
    ).astype(jnp.bfloat16)

    # Per-tile cast of f32 adj -> bf16 (VPU op, hidden under the adj DMA).
    o_ref[...] += jnp.dot(
        adj_ref[...].astype(jnp.bfloat16), sup,
        preferred_element_type=jnp.float32,
    )

    @pl.when(k == pl.num_programs(1) - 1)
    def _():
        o_ref[...] = jnp.maximum(o_ref[...], 0.0)


def _aggregate_kernel(adj_ref, sup_ref, o_ref):
    """Fallback (large K*F): o[i,:] = relu( sum_k adj[i,k] @ support[k,:] )."""
    k = pl.program_id(1)

    @pl.when(k == 0)
    def _():
        o_ref[...] = jnp.zeros_like(o_ref)

    o_ref[...] += jnp.dot(
        adj_ref[...].astype(jnp.bfloat16), sup_ref[...],
        preferred_element_type=jnp.float32,
    )

    @pl.when(k == pl.num_programs(1) - 1)
    def _():
        o_ref[...] = jnp.maximum(o_ref[...], 0.0)


def graph_convolution(x, adj, weight):
    """GCN layer forward: relu(adj @ (x @ weight)).  dropout p=0.0 is a no-op.

    x:      [N, K] float32
    adj:    [N, N] float32 (dense)
    weight: [K, F] float32
    returns [N, F] float32
    """
    # TODO(synk): nonzero-p training dropout would need pltpu.prng_seed /
    # pltpu.prng_random_bits in-kernel; p=0.0 in the module -> identity.
    N, K = x.shape
    F = weight.shape[1]
    assert adj.shape == (N, N)
    assert weight.shape[0] == K

    N_pad = _round_up(N, 128)      # row + contraction tiling
    F_pad = _round_up(F, 128)      # lane-dense output stores

    budget = _vmem_budget_bytes()
    alloc = budget // 2            # conservative share of the scoped limit

    # Pad only when required (no-op when N is already a multiple of 128);
    # adj and x stay f32 (cast per-tile in-kernel). Weight is tiny: pad+cast.
    x_p = x if N_pad == N else jnp.pad(x, ((0, N_pad - N), (0, 0)))
    adj_p = adj if N_pad == N else jnp.pad(adj, ((0, N_pad - N), (0, N_pad - N)))
    w_p = jnp.pad(weight, ((0, 0), (0, F_pad - F))).astype(jnp.bfloat16)

    fuse = (2 * K * F_pad * 2) <= min(8 * 1024 * 1024, alloc // 2)

    if fuse:
        def footprint(tm, tk):
            return (2 * tm * tk * 4        # adj blocks (f32, double-buffered)
                    + 2 * tk * K * 4       # x blocks (f32, double-buffered)
                    + 2 * K * F_pad * 2    # resident weight (bf16)
                    + 2 * tm * F_pad * 4)  # f32 output/accumulator block

        tm, tk = _select_tiles(N_pad, alloc, footprint)

        out_p = pl.pallas_call(
            _gcn_fused_kernel,
            out_shape=jax.ShapeDtypeStruct((N_pad, F_pad), jnp.float32),
            grid_spec=pltpu.PrefetchScalarGridSpec(
                num_scalar_prefetch=0,
                grid=(N_pad // tm, N_pad // tk),
                in_specs=[
                    pl.BlockSpec((tm, tk), lambda i, k: (i, k)),    # adj (f32)
                    pl.BlockSpec((tk, K), lambda i, k: (k, 0)),     # x   (f32)
                    pl.BlockSpec((K, F_pad), lambda i, k: (0, 0)),  # W (bf16)
                ],
                out_specs=pl.BlockSpec((tm, F_pad), lambda i, k: (i, 0)),
            ),
            compiler_params=pltpu.CompilerParams(
                dimension_semantics=("parallel", "arbitrary"),
                vmem_limit_bytes=budget,
            ),
        )(adj_p, x_p, w_p)
    else:
        # Weight too large to hold resident: let XLA do support = x @ W,
        # then aggregate + ReLU in Pallas.
        support = jnp.dot(
            x_p.astype(jnp.bfloat16), w_p, preferred_element_type=jnp.float32
        ).astype(jnp.bfloat16)

        def footprint(tm, tk):
            return (2 * tm * tk * 4        # adj blocks (f32, double-buffered)
                    + 2 * tk * F_pad * 2   # support blocks (bf16)
                    + 2 * tm * F_pad * 4)  # f32 output/accumulator block

        tm, tk = _select_tiles(N_pad, alloc, footprint)

        out_p = pl.pallas_call(
            _aggregate_kernel,
            out_shape=jax.ShapeDtypeStruct((N_pad, F_pad), jnp.float32),
            grid_spec=pltpu.PrefetchScalarGridSpec(
                num_scalar_prefetch=0,
                grid=(N_pad // tm, N_pad // tk),
                in_specs=[
                    pl.BlockSpec((tm, tk), lambda i, k: (i, k)),       # adj
                    pl.BlockSpec((tk, F_pad), lambda i, k: (k, 0)),    # support
                ],
                out_specs=pl.BlockSpec((tm, F_pad), lambda i, k: (i, 0)),
            ),
            compiler_params=pltpu.CompilerParams(
                dimension_semantics=("parallel", "arbitrary"),
                vmem_limit_bytes=budget,
            ),
        )(adj_p, support)

    return out_p[:N, :F]


def reference_gcn_f32(x, adj, weight):
    return jnp.maximum(adj @ (x @ weight), 0.0)


def reference_gcn_bf16(x, adj, weight):
    # Same numerics path as the kernel (bf16 MXU inputs, f32 accumulation).
    sup = jnp.dot(
        x.astype(jnp.bfloat16), weight.astype(jnp.bfloat16),
        preferred_element_type=jnp.float32,
    ).astype(jnp.bfloat16)
    out = jnp.dot(
        adj.astype(jnp.bfloat16), sup, preferred_element_type=jnp.float32
    )
    return jnp.maximum(out, 0.0)


if __name__ == "__main__":
    # Small, deterministic shapes consistent with the module.
    N = 128            # number of graph nodes
    in_features = 32
    out_features = 64

    key = jax.random.PRNGKey(0)
    k_x, k_adj, k_w = jax.random.split(key, 3)

    x = jax.random.normal(k_x, (N, in_features), dtype=jnp.float32)

    # Simple symmetric, row-normalized dense adjacency (stand-in for spmm input).
    a = (jax.random.uniform(k_adj, (N, N)) > 0.9).astype(jnp.float32)
    a = jnp.maximum(a, a.T) + jnp.eye(N, dtype=jnp.float32)
    adj = a / jnp.sum(a, axis=1, keepdims=True)

    # Xavier-uniform init, matching torch.nn.init.xavier_uniform_.
    bound = math.sqrt(6.0 / (in_features + out_features))
    weight = jax.random.uniform(
        k_w, (in_features, out_features), minval=-bound, maxval=bound,
        dtype=jnp.float32,
    )

    out = graph_convolution(x, adj, weight)
    out = jax.block_until_ready(out)
    assert out.shape == (N, out_features)

    # Exact-path check vs a bf16-input / f32-accumulate reference.
    ref_bf16 = reference_gcn_bf16(x, adj, weight)
    assert jnp.allclose(out, ref_bf16, atol=1e-4, rtol=1e-4), "mismatch vs bf16 reference"

    # Semantics check vs the full-f32 PyTorch-equivalent reference (bf16 MXU
    # inputs introduce ~0.4% rounding; tolerance loosened accordingly).
    ref_f32 = reference_gcn_f32(x, adj, weight)
    assert jnp.allclose(out, ref_f32, atol=5e-2, rtol=5e-2), "mismatch vs f32 reference"

    print("KERNEL_OK")
</pallas_src>

<mosaic_0001>
module attributes {stable_mosaic.version = 11 : i64} {
  func.func @_gcn_fused_kernel(%arg0: i32, %arg1: i32, %arg2: memref<128x128xf32, #tpu.memory_space<vmem>>, %arg3: memref<128x32xf32, #tpu.memory_space<vmem>>, %arg4: memref<32x128xbf16, #tpu.memory_space<vmem>>, %arg5: memref<128x128xf32, #tpu.memory_space<vmem>>) attributes {dimension_semantics = [#tpu.dimension_semantics<parallel>, #tpu.dimension_semantics<arbitrary>], iteration_bounds = array<i64: 1, 1>, scalar_prefetch = 0 : i64, scratch_operands = 0 : i64, tpu.core_type = #tpu.core_type<tc>, window_params = [{transform_indices = @transform_0, window_bounds = array<i64: 128, 128>}, {transform_indices = @transform_1, window_bounds = array<i64: 128, 32>}, {pipeline_mode = #tpu.pipeline_mode<synchronous>, transform_indices = @transform_2, window_bounds = array<i64: 32, 128>}, {transform_indices = @transform_3, window_bounds = array<i64: 128, 128>}]} {
    %c0_i32 = arith.constant 0 : i32
    %0 = arith.cmpi eq, %arg1, %c0_i32 : i32
    %1 = arith.extui %0 : i1 to i32
    %c0_i32_0 = arith.constant 0 : i32
    %2 = arith.cmpi ne, %1, %c0_i32_0 : i32
    scf.if %2 {
      %cst_13 = arith.constant 0.000000e+00 : f32
      %17 = vector.broadcast %cst_13 : f32 to vector<128x128xf32>
      %c0_14 = arith.constant 0 : index
      %c0_15 = arith.constant 0 : index
      %18 = vector.load %arg5[%c0_14, %c0_15] : memref<128x128xf32, #tpu.memory_space<vmem>>, vector<128x128xf32>
      tpu.vector_store %arg5[%c0_14, %c0_15], %17 {strides = array<i32>} : memref<128x128xf32, #tpu.memory_space<vmem>>, vector<128x128xf32>,
    } else {
    }
    %c0 = arith.constant 0 : index
    %c0_1 = arith.constant 0 : index
    %3 = vector.load %arg3[%c0, %c0_1] : memref<128x32xf32, #tpu.memory_space<vmem>>, vector<128x32xf32>
    %4 = arith.truncf %3 : vector<128x32xf32> to vector<128x32xbf16>
    %c0_2 = arith.constant 0 : index
    %c0_3 = arith.constant 0 : index
    %5 = vector.load %arg4[%c0_2, %c0_3] : memref<32x128xbf16, #tpu.memory_space<vmem>>, vector<32x128xbf16>
    %cst = arith.constant dense<0.000000e+00> : vector<128x128xf32>
    %6 = tpu.matmul %4, %5, %cst {dimension_numbers = #tpu.dot_dimension_numbers<[1], [0], [0], [1], [0, 0, 1, 1], [], []>} : vector<128x32xbf16>, vector<32x128xbf16>, vector<128x128xf32> -> vector<128x128xf32>
    %7 = arith.truncf %6 : vector<128x128xf32> to vector<128x128xbf16>
    %c0_4 = arith.constant 0 : index
    %c0_5 = arith.constant 0 : index
    %8 = vector.load %arg5[%c0_4, %c0_5] : memref<128x128xf32, #tpu.memory_space<vmem>>, vector<128x128xf32>
    %c0_6 = arith.constant 0 : index
    %c0_7 = arith.constant 0 : index
    %9 = vector.load %arg2[%c0_6, %c0_7] : memref<128x128xf32, #tpu.memory_space<vmem>>, vector<128x128xf32>
    %10 = arith.truncf %9 : vector<128x128xf32> to vector<128x128xbf16>
    %cst_8 = arith.constant dense<0.000000e+00> : vector<128x128xf32>
    %11 = tpu.matmul %10, %7, %cst_8 {dimension_numbers = #tpu.dot_dimension_numbers<[1], [0], [0], [1], [0, 0, 1, 1], [], []>} : vector<128x128xbf16>, vector<128x128xbf16>, vector<128x128xf32> -> vector<128x128xf32>
    %12 = arith.addf %8, %11 : vector<128x128xf32>
    %c0_9 = arith.constant 0 : index
    %c0_10 = arith.constant 0 : index
    %13 = vector.load %arg5[%c0_9, %c0_10] : memref<128x128xf32, #tpu.memory_space<vmem>>, vector<128x128xf32>
    tpu.vector_store %arg5[%c0_9, %c0_10], %12 {strides = array<i32>} : memref<128x128xf32, #tpu.memory_space<vmem>>, vector<128x128xf32>,
    %c0_i32_11 = arith.constant 0 : i32
    %14 = arith.cmpi eq, %arg1, %c0_i32_11 : i32
    %15 = arith.extui %14 : i1 to i32
    %c0_i32_12 = arith.constant 0 : i32
    %16 = arith.cmpi ne, %15, %c0_i32_12 : i32
    scf.if %16 {
      %c0_13 = arith.constant 0 : index
      %c0_14 = arith.constant 0 : index
      %17 = vector.load %arg5[%c0_13, %c0_14] : memref<128x128xf32, #tpu.memory_space<vmem>>, vector<128x128xf32>
      %cst_15 = arith.constant 0.000000e+00 : f32
      %18 = vector.broadcast %cst_15 : f32 to vector<128x128xf32>
      %19 = arith.maximumf %17, %18 : vector<128x128xf32>
      %c0_16 = arith.constant 0 : index
      %c0_17 = arith.constant 0 : index
      %20 = vector.load %arg5[%c0_16, %c0_17] : memref<128x128xf32, #tpu.memory_space<vmem>>, vector<128x128xf32>
      tpu.vector_store %arg5[%c0_16, %c0_17], %19 {strides = array<i32>} : memref<128x128xf32, #tpu.memory_space<vmem>>, vector<128x128xf32>,
    } else {
    }
    return
  }
  func.func @transform_0(%arg0: i32, %arg1: i32) -> (i32, i32) {
    %c0_i32 = arith.constant 0 : i32
    return %arg0, %arg1 : i32, i32
  }
  func.func @transform_1(%arg0: i32, %arg1: i32) -> (i32, i32) {
    %c0_i32 = arith.constant 0 : i32
    %c0_i32_0 = arith.constant 0 : i32
    return %arg1, %c0_i32 : i32, i32
  }
  func.func @transform_2(%arg0: i32, %arg1: i32) -> (i32, i32) {
    %c0_i32 = arith.constant 0 : i32
    %c0_i32_0 = arith.constant 0 : i32
    %c0_i32_1 = arith.constant 0 : i32
    return %c0_i32, %c0_i32_0 : i32, i32
  }
  func.func @transform_3(%arg0: i32, %arg1: i32) -> (i32, i32) {
    %c0_i32 = arith.constant 0 : i32
    %c0_i32_0 = arith.constant 0 : i32
    return %arg0, %c0_i32 : i32, i32
  }
}

</mosaic_0001>

<llo_original>
// kernel: tpu_custom_call.1
$region0: #{tpu_custom_call.1}
  #allocation0 [shape = 'u32[]', space=smem, size = 0x4, offset = 0x4, fixed_abs, tag = 'smem constant byte address 0x4 - core index']
  #allocation1 [shape = 'u32[144,128]{1,0:T(1,128)}', space=vmem, size = 0x12000, scoped, tag = 'internal scratch']
  %s0 = inlined_call_operand.vmem [shape: f32[128,128], index: 0, kind: input, shape index: {}]
  %s1 = inlined_call_operand.vmem [shape: f32[128,32], index: 1, kind: input, shape index: {}]
  %s2 = inlined_call_operand.vmem [shape: bf16[32,128], index: 2, kind: input, shape index: {}]
  %s3 = inlined_call_operand.hbm [shape: f32[128,128], index: 3, kind: output, shape index: {}]
  %s4 = sld [smem:[#allocation0]]
  $region30: #{tpu_custom_call.1} parent=0
    _
  %s6 = ssub.s32 1, %s4
  %s7 = scalar_select 0, %s6, %s4
  $region1: #{tpu_custom_call.1} parent=0
    #allocation2 [shape = 'u8[65536]{0}', space=vmem, size = 0x10000, scoped, tag = 'output window, operand 0, single buffered']
    #allocation3 [shape = 's32[1]{0}', space=sflag, size = 0x4, scoped, tag = 'scoped memory for tpu_custom_call.1']
    %8 = vsyncpa [#allocation3], 0
    // Predicated region
    $region2: #{tpu_custom_call.1} parent=1 // pred_check
      _
    $region3: #{tpu_custom_call.1} parent=1 // pred_check_branch
      %10 = sbr.rel (0) target = $region5
    $region4: #{tpu_custom_call.1} parent=1 // pred_region
      _
    $region5: #{tpu_custom_call.1} parent=1 // pred_fallthru
      _
    // Predicated region
    $region6: #{tpu_custom_call.1} parent=1 // pred_check
      _
    $region7: #{tpu_custom_call.1} parent=1 // pred_check_branch
      %12 = sbr.rel (0) target = $region9
    $region8: #{tpu_custom_call.1} parent=1 // pred_region
      _
    $region9: #{tpu_custom_call.1} parent=1 // pred_fallthru
      _
    // Predicated region
    $region10: #{tpu_custom_call.1} parent=1 // pred_check
      _
    $region11: #{tpu_custom_call.1} parent=1 // pred_check_branch
      %14 = sbr.rel (0) target = $region13
    $region12: #{tpu_custom_call.1} parent=1 // pred_region
      _
    $region13: #{tpu_custom_call.1} parent=1 // pred_fallthru
      _
    %p16 = scmp.eq.s32.totalorder 0, 0
    // Predicated region
    $region14: #{tpu_custom_call.1} parent=1 // pred_check
      %p17 = pneg %p16
    $region15: #{tpu_custom_call.1} parent=1 // pred_check_branch
      %19 = sbr.rel (%p17) target = $region17
    $region16: #{tpu_custom_call.1} parent=1 // pred_region
      %20 = vst [vmem:[#allocation2] sm:$0xff] 0.0
      %21 = vst [vmem:[#allocation2 + $0x8] sm:$0xff] 0.0
      %22 = vst [vmem:[#allocation2 + $0x10] sm:$0xff] 0.0
      %23 = vst [vmem:[#allocation2 + $0x18] sm:$0xff] 0.0
      %24 = vst [vmem:[#allocation2 + $0x20] sm:$0xff] 0.0
      %25 = vst [vmem:[#allocation2 + $0x28] sm:$0xff] 0.0
      %26 = vst [vmem:[#allocation2 + $0x30] sm:$0xff] 0.0
      %27 = vst [vmem:[#allocation2 + $0x38] sm:$0xff] 0.0
      %28 = vst [vmem:[#allocation2 + $0x40] sm:$0xff] 0.0
      %29 = vst [vmem:[#allocation2 + $0x48] sm:$0xff] 0.0
      %30 = vst [vmem:[#allocation2 + $0x50] sm:$0xff] 0.0
      %31 = vst [vmem:[#allocation2 + $0x58] sm:$0xff] 0.0
      %32 = vst [vmem:[#allocation2 + $0x60] sm:$0xff] 0.0
      %33 = vst [vmem:[#allocation2 + $0x68] sm:$0xff] 0.0
      %34 = vst [vmem:[#allocation2 + $0x70] sm:$0xff] 0.0
      %35 = vst [vmem:[#allocation2 + $0x78] sm:$0xff] 0.0
    $region17: #{tpu_custom_call.1} parent=1 // pred_fallthru
      _
    %v36 = vld [vmem:[%s1] sm:$0xff]
    %v37 = vld [vmem:[%s1 + $0x8] sm:$0xff]
    %v38 = vld [vmem:[%s1 + $0x10] sm:$0xff]
    %v39 = vld [vmem:[%s1 + $0x18] sm:$0xff]
    %v40 = vld [vmem:[%s1 + $0x20] sm:$0xff]
    %v41 = vld [vmem:[%s1 + $0x28] sm:$0xff]
    %v42 = vld [vmem:[%s1 + $0x30] sm:$0xff]
    %v43 = vld [vmem:[%s1 + $0x38] sm:$0xff]
    %v44 = vld [vmem:[%s1 + $0x40] sm:$0xff]
    %v45 = vld [vmem:[%s1 + $0x48] sm:$0xff]
    %v46 = vld [vmem:[%s1 + $0x50] sm:$0xff]
    %v47 = vld [vmem:[%s1 + $0x58] sm:$0xff]
    %v48 = vld [vmem:[%s1 + $0x60] sm:$0xff]
    %v49 = vld [vmem:[%s1 + $0x68] sm:$0xff]
    %v50 = vld [vmem:[%s1 + $0x70] sm:$0xff]
    %v51 = vld [vmem:[%s1 + $0x78] sm:$0xff]
    %v52 = vpack.c.bf16 %v37, %v36
    %v53 = vpack.c.bf16 %v39, %v38
    %v54 = vpack.c.bf16 %v41, %v40
    %v55 = vpack.c.bf16 %v43, %v42
    %v56 = vpack.c.bf16 %v45, %v44
    %v57 = vpack.c.bf16 %v47, %v46
    %v58 = vpack.c.bf16 %v49, %v48
    %v59 = vpack.c.bf16 %v51, %v50
    %v60 = vld [vmem:[%s2] sm:$0xf]
    %v61 = vld [vmem:[%s2 + $0x4] sm:$0xf]
    %v62 = vld [vmem:[%s2 + $0x8] sm:$0xf]
    %v63 = vld [vmem:[%s2 + $0xc] sm:$0xf]
    %v68 = vunpack.c.l.b16 %v60
    %v69 = vunpack.c.l.b16 %v61
    %v70 = vunpack.c.l.b16 %v62
    %v71 = vunpack.c.l.b16 %v63
    %v72 = vpack.c.b16 %v69, %v68
    %v73 = vpack.c.b16 %v71, %v70
    %vm76 = vcmask 261120
    %v78 = vsel %vm76, %v52, 0
    %v81 = vsel %vm76, %v53, 0
    %v84 = vsel %vm76, %v54, 0
    %v87 = vsel %vm76, %v55, 0
    %v90 = vsel %vm76, %v56, 0
    %v93 = vsel %vm76, %v57, 0
    %v96 = vsel %vm76, %v58, 0
    %v99 = vsel %vm76, %v59, 0
    %101 = vmatprep.subr.bf16.mxu0 0
    %102 = vmatpush1.bf16.msra.mxu0 %v72
    %103 = vmatprep.subr.bf16.mxu0 0
    %104 = vmatpush1.bf16.msra.mxu0 %v73
    %105 = vmatprep.subr.bf16.mxu0 0
    %106 = vmatpush1.bf16.msra.mxu0 0
    %107 = vmatprep.subr.bf16.mxu0 0
    %108 = vmatpush1.bf16.msra.mxu0 0
    %109 = vmatprep.subr.bf16.mxu0 0
    %110 = vmatpush1.bf16.msra.mxu0 0
    %111 = vmatprep.subr.bf16.mxu0 0
    %112 = vmatpush1.bf16.msra.mxu0 0
    %113 = vmatprep.subr.bf16.mxu0 0
    %114 = vmatpush1.bf16.msra.mxu0 0
    %115 = vmatprep.subr.bf16.mxu0 0
    %116 = vmatpush1.bf16.msra.mxu0 0
    %117 = vmatprep.subr.bf16.mxu0 0
    %118 = vmatpush1.bf16.msra.mxu0 0
    %119 = vmatprep.subr.bf16.mxu0 0
    %120 = vmatpush1.bf16.msra.mxu0 0
    %121 = vmatprep.subr.bf16.mxu0 0
    %122 = vmatpush1.bf16.msra.mxu0 0
    %123 = vmatprep.subr.bf16.mxu0 0
    %124 = vmatpush1.bf16.msra.mxu0 0
    %125 = vmatprep.subr.bf16.mxu0 0
    %126 = vmatpush1.bf16.msra.mxu0 0
    %127 = vmatprep.subr.bf16.mxu0 0
    %128 = vmatpush1.bf16.msra.mxu0 0
    %129 = vmatprep.subr.bf16.mxu0 0
    %130 = vmatpush1.bf16.msra.mxu0 0
    %131 = vmatprep.subr.bf16.mxu0 0
    %132 = vmatpush1.bf16.msra.mxu0 0
    %133 = vmatprep.mubr.bf16.mxu0 0
    %134 = vmatmul.mubr.bf16.gmra.mrb[0].mxu0 %v78
    %v135 = vpop.f32.mrb[0].mxu0
    %v136 = vadd.f32 0.0, %v135
    %v137 = vpop.f32.mrb[0].mxu0
    %v138 = vpop.f32.mrb[0].mxu0
    %v139 = vadd.f32 0.0, %v138
    %v140 = vpop.f32.mrb[0].mxu0
    %141 = vmatprep.mubr.bf16.mxu0 0
    %142 = vmatmul.mubr.bf16.gmra.mrb[0].mxu0 %v81
    %v143 = vpop.f32.mrb[0].mxu0
    %v144 = vadd.f32 0.0, %v143
    %v145 = vpop.f32.mrb[0].mxu0
    %v146 = vpop.f32.mrb[0].mxu0
    %v147 = vadd.f32 0.0, %v146
    %v148 = vpop.f32.mrb[0].mxu0
    %149 = vmatprep.mubr.bf16.mxu0 0
    %150 = vmatmul.mubr.bf16.gmra.mrb[0].mxu0 %v84
    %v151 = vpop.f32.mrb[0].mxu0
    %v152 = vadd.f32 0.0, %v151
    %v153 = vpop.f32.mrb[0].mxu0
    %v154 = vpop.f32.mrb[0].mxu0
    %v155 = vadd.f32 0.0, %v154
    %v156 = vpop.f32.mrb[0].mxu0
    %157 = vmatprep.mubr.bf16.mxu0 0
    %158 = vmatmul.mubr.bf16.gmra.mrb[0].mxu0 %v87
    %v159 = vpop.f32.mrb[0].mxu0
    %v160 = vadd.f32 0.0, %v159
    %v161 = vpop.f32.mrb[0].mxu0
    %v162 = vpop.f32.mrb[0].mxu0
    %v163 = vadd.f32 0.0, %v162
    %v164 = vpop.f32.mrb[0].mxu0
    %165 = vmatprep.mubr.bf16.mxu0 0
    %166 = vmatmul.mubr.bf16.gmra.mrb[0].mxu0 %v90
    %v167 = vpop.f32.mrb[0].mxu0
    %v168 = vadd.f32 0.0, %v167
    %v169 = vpop.f32.mrb[0].mxu0
    %v170 = vpop.f32.mrb[0].mxu0
    %v171 = vadd.f32 0.0, %v170
    %v172 = vpop.f32.mrb[0].mxu0
    %173 = vmatprep.mubr.bf16.mxu0 0
    %174 = vmatmul.mubr.bf16.gmra.mrb[0].mxu0 %v93
    %v175 = vpop.f32.mrb[0].mxu0
    %v176 = vadd.f32 0.0, %v175
    %v177 = vpop.f32.mrb[0].mxu0
    %v178 = vpop.f32.mrb[0].mxu0
    %v179 = vadd.f32 0.0, %v178
    %v180 = vpop.f32.mrb[0].mxu0
    %181 = vmatprep.mubr.bf16.mxu0 0
    %182 = vmatmul.mubr.bf16.gmra.mrb[0].mxu0 %v96
    %v183 = vpop.f32.mrb[0].mxu0
    %v184 = vadd.f32 0.0, %v183
    %v185 = vpop.f32.mrb[0].mxu0
    %v186 = vpop.f32.mrb[0].mxu0
    %v187 = vadd.f32 0.0, %v186
    %v188 = vpop.f32.mrb[0].mxu0
    %189 = vmatprep.mubr.bf16.mxu0 0
    %190 = vmatmul.mubr.bf16.gmra.mrb[0].mxu0 %v99
    %v191 = vpop.f32.mrb[0].mxu0
    %v192 = vadd.f32 0.0, %v191
    %v193 = vpop.f32.mrb[0].mxu0
    %v194 = vpop.f32.mrb[0].mxu0
    %v195 = vadd.f32 0.0, %v194
    %v196 = vpop.f32.mrb[0].mxu0
    %197 = vdwg.mxu0
    %v198 = vpack.c.bf16 %v139, %v136
    %v199 = vpack.c.bf16 %v147, %v144
    %v200 = vpack.c.bf16 %v155, %v152
    %v201 = vpack.c.bf16 %v163, %v160
    %v202 = vpack.c.bf16 %v171, %v168
    %v203 = vpack.c.bf16 %v179, %v176
    %v204 = vpack.c.bf16 %v187, %v184
    %v205 = vpack.c.bf16 %v195, %v192
    %v206 = vld [vmem:[#allocation2] sm:$0xff]
    %v207 = vld [vmem:[#allocation2 + $0x8] sm:$0xff]
    %v208 = vld [vmem:[#allocation2 + $0x10] sm:$0xff]
    %v209 = vld [vmem:[#allocation2 + $0x18] sm:$0xff]
    %v210 = vld [vmem:[#allocation2 + $0x20] sm:$0xff]
    %v211 = vld [vmem:[#allocation2 + $0x28] sm:$0xff]
    %v212 = vld [vmem:[#allocation2 + $0x30] sm:$0xff]
    %v213 = vld [vmem:[#allocation2 + $0x38] sm:$0xff]
    %v214 = vld [vmem:[#allocation2 + $0x40] sm:$0xff]
    %v215 = vld [vmem:[#allocation2 + $0x48] sm:$0xff]
    %v216 = vld [vmem:[#allocation2 + $0x50] sm:$0xff]
    %v217 = vld [vmem:[#allocation2 + $0x58] sm:$0xff]
    %v218 = vld [vmem:[#allocation2 + $0x60] sm:$0xff]
    %v219 = vld [vmem:[#allocation2 + $0x68] sm:$0xff]
    %v220 = vld [vmem:[#allocation2 + $0x70] sm:$0xff]
    %v221 = vld [vmem:[#allocation2 + $0x78] sm:$0xff]
    %v222 = vld [vmem:[%s0] sm:$0xff]
    %v223 = vld [vmem:[%s0 + $0x8] sm:$0xff]
    %v224 = vld [vmem:[%s0 + $0x10] sm:$0xff]
    %v225 = vld [vmem:[%s0 + $0x18] sm:$0xff]
    %v226 = vld [vmem:[%s0 + $0x20] sm:$0xff]
    %v227 = vld [vmem:[%s0 + $0x28] sm:$0xff]
    %v228 = vld [vmem:[%s0 + $0x30] sm:$0xff]
    %v229 = vld [vmem:[%s0 + $0x38] sm:$0xff]
    %v230 = vld [vmem:[%s0 + $0x40] sm:$0xff]
    %v231 = vld [vmem:[%s0 + $0x48] sm:$0xff]
    %v232 = vld [vmem:[%s0 + $0x50] sm:$0xff]
    %v233 = vld [vmem:[%s0 + $0x58] sm:$0xff]
    %v234 = vld [vmem:[%s0 + $0x60] sm:$0xff]
    %v235 = vld [vmem:[%s0 + $0x68] sm:$0xff]
    %v236 = vld [vmem:[%s0 + $0x70] sm:$0xff]
    %v237 = vld [vmem:[%s0 + $0x78] sm:$0xff]
    %v238 = vpack.c.bf16 %v223, %v222
    %v239 = vpack.c.bf16 %v225, %v224
    %v240 = vpack.c.bf16 %v227, %v226
    %v241 = vpack.c.bf16 %v229, %v228
    %v242 = vpack.c.bf16 %v231, %v230
    %v243 = vpack.c.bf16 %v233, %v232
    %v244 = vpack.c.bf16 %v235, %v234
    %v245 = vpack.c.bf16 %v237, %v236
    %246 = vmatprep.subr.bf16.mxu0 0
    %247 = vmatpush1.bf16.msra.mxu0 %v198
    %248 = vmatprep.subr.bf16.mxu0 0
    %249 = vmatpush1.bf16.msra.mxu0 %v199
    %250 = vmatprep.subr.bf16.mxu0 0
    %251 = vmatpush1.bf16.msra.mxu0 %v200
    %252 = vmatprep.subr.bf16.mxu0 0
    %253 = vmatpush1.bf16.msra.mxu0 %v201
    %254 = vmatprep.subr.bf16.mxu0 0
    %255 = vmatpush1.bf16.msra.mxu0 %v202
    %256 = vmatprep.subr.bf16.mxu0 0
    %257 = vmatpush1.bf16.msra.mxu0 %v203
    %258 = vmatprep.subr.bf16.mxu0 0
    %259 = vmatpush1.bf16.msra.mxu0 %v204
    %260 = vmatprep.subr.bf16.mxu0 0
    %261 = vmatpush1.bf16.msra.mxu0 %v205
    %262 = vmatprep.subr.bf16.mxu0 0
    %263 = vmatpush1.bf16.msra.mxu0 0
    %264 = vmatprep.subr.bf16.mxu0 0
    %265 = vmatpush1.bf16.msra.mxu0 0
    %266 = vmatprep.subr.bf16.mxu0 0
    %267 = vmatpush1.bf16.msra.mxu0 0
    %268 = vmatprep.subr.bf16.mxu0 0
    %269 = vmatpush1.bf16.msra.mxu0 0
    %270 = vmatprep.subr.bf16.mxu0 0
    %271 = vmatpush1.bf16.msra.mxu0 0
    %272 = vmatprep.subr.bf16.mxu0 0
    %273 = vmatpush1.bf16.msra.mxu0 0
    %274 = vmatprep.subr.bf16.mxu0 0
    %275 = vmatpush1.bf16.msra.mxu0 0
    %276 = vmatprep.subr.bf16.mxu0 0
    %277 = vmatpush1.bf16.msra.mxu0 0
    %278 = vmatprep.mubr.bf16.mxu0 0
    %279 = vmatmul.mubr.bf16.gmra.mrb[0].mxu0 %v238
    %v280 = vpop.f32.mrb[0].mxu0
    %v281 = vadd.f32 0.0, %v280
    %v282 = vpop.f32.mrb[0].mxu0
    %v283 = vpop.f32.mrb[0].mxu0
    %v284 = vadd.f32 0.0, %v283
    %v285 = vpop.f32.mrb[0].mxu0
    %286 = vmatprep.mubr.bf16.mxu0 0
    %287 = vmatmul.mubr.bf16.gmra.mrb[0].mxu0 %v239
    %v288 = vpop.f32.mrb[0].mxu0
    %v289 = vadd.f32 0.0, %v288
    %v290 = vpop.f32.mrb[0].mxu0
    %v291 = vpop.f32.mrb[0].mxu0
    %v292 = vadd.f32 0.0, %v291
    %v293 = vpop.f32.mrb[0].mxu0
    %294 = vmatprep.mubr.bf16.mxu0 0
    %295 = vmatmul.mubr.bf16.gmra.mrb[0].mxu0 %v240
    %v296 = vpop.f32.mrb[0].mxu0
    %v297 = vadd.f32 0.0, %v296
    %v298 = vpop.f32.mrb[0].mxu0
    %v299 = vpop.f32.mrb[0].mxu0
    %v300 = vadd.f32 0.0, %v299
    %v301 = vpop.f32.mrb[0].mxu0
    %302 = vmatprep.mubr.bf16.mxu0 0
    %303 = vmatmul.mubr.bf16.gmra.mrb[0].mxu0 %v241
    %v304 = vpop.f32.mrb[0].mxu0
    %v305 = vadd.f32 0.0, %v304
    %v306 = vpop.f32.mrb[0].mxu0
    %v307 = vpop.f32.mrb[0].mxu0
    %v308 = vadd.f32 0.0, %v307
    %v309 = vpop.f32.mrb[0].mxu0
    %310 = vmatprep.mubr.bf16.mxu0 0
    %311 = vmatmul.mubr.bf16.gmra.mrb[0].mxu0 %v242
    %v312 = vpop.f32.mrb[0].mxu0
    %v313 = vadd.f32 0.0, %v312
    %v314 = vpop.f32.mrb[0].mxu0
    %v315 = vpop.f32.mrb[0].mxu0
    %v316 = vadd.f32 0.0, %v315
    %v317 = vpop.f32.mrb[0].mxu0
    %318 = vmatprep.mubr.bf16.mxu0 0
    %319 = vmatmul.mubr.bf16.gmra.mrb[0].mxu0 %v243
    %v320 = vpop.f32.mrb[0].mxu0
    %v321 = vadd.f32 0.0, %v320
    %v322 = vpop.f32.mrb[0].mxu0
    %v323 = vpop.f32.mrb[0].mxu0
    %v324 = vadd.f32 0.0, %v323
    %v325 = vpop.f32.mrb[0].mxu0
    %326 = vmatprep.mubr.bf16.mxu0 0
    %327 = vmatmul.mubr.bf16.gmra.mrb[0].mxu0 %v244
    %v328 = vpop.f32.mrb[0].mxu0
    %v329 = vadd.f32 0.0, %v328
    %v330 = vpop.f32.mrb[0].mxu0
    %v331 = vpop.f32.mrb[0].mxu0
    %v332 = vadd.f32 0.0, %v331
    %v333 = vpop.f32.mrb[0].mxu0
    %334 = vmatprep.mubr.bf16.mxu0 0
    %335 = vmatmul.mubr.bf16.gmra.mrb[0].mxu0 %v245
    %v336 = vpop.f32.mrb[0].mxu0
    %v337 = vadd.f32 0.0, %v336
    %v338 = vpop.f32.mrb[0].mxu0
    %v339 = vpop.f32.mrb[0].mxu0
    %v340 = vadd.f32 0.0, %v339
    %v341 = vpop.f32.mrb[0].mxu0
    %342 = vdwg.mxu0
    %v343 = vadd.f32 %v206, %v281
    %v344 = vadd.f32 %v207, %v284
    %v345 = vadd.f32 %v208, %v289
    %v346 = vadd.f32 %v209, %v292
    %v347 = vadd.f32 %v210, %v297
    %v348 = vadd.f32 %v211, %v300
    %v349 = vadd.f32 %v212, %v305
    %v350 = vadd.f32 %v213, %v308
    %v351 = vadd.f32 %v214, %v313
    %v352 = vadd.f32 %v215, %v316
    %v353 = vadd.f32 %v216, %v321
    %v354 = vadd.f32 %v217, %v324
    %v355 = vadd.f32 %v218, %v329
    %v356 = vadd.f32 %v219, %v332
    %v357 = vadd.f32 %v220, %v337
    %v358 = vadd.f32 %v221, %v340
    %359 = vst [vmem:[#allocation2] sm:$0xff] %v343
    %360 = vst [vmem:[#allocation2 + $0x8] sm:$0xff] %v344
    %361 = vst [vmem:[#allocation2 + $0x10] sm:$0xff] %v345
    %362 = vst [vmem:[#allocation2 + $0x18] sm:$0xff] %v346
    %363 = vst [vmem:[#allocation2 + $0x20] sm:$0xff] %v347
    %364 = vst [vmem:[#allocation2 + $0x28] sm:$0xff] %v348
    %365 = vst [vmem:[#allocation2 + $0x30] sm:$0xff] %v349
    %366 = vst [vmem:[#allocation2 + $0x38] sm:$0xff] %v350
    %367 = vst [vmem:[#allocation2 + $0x40] sm:$0xff] %v351
    %368 = vst [vmem:[#allocation2 + $0x48] sm:$0xff] %v352
    %369 = vst [vmem:[#allocation2 + $0x50] sm:$0xff] %v353
    %370 = vst [vmem:[#allocation2 + $0x58] sm:$0xff] %v354
    %371 = vst [vmem:[#allocation2 + $0x60] sm:$0xff] %v355
    %372 = vst [vmem:[#allocation2 + $0x68] sm:$0xff] %v356
    %373 = vst [vmem:[#allocation2 + $0x70] sm:$0xff] %v357
    %374 = vst [vmem:[#allocation2 + $0x78] sm:$0xff] %v358
    // Predicated region
    $region18: #{tpu_custom_call.1} parent=1 // pred_check
      %p375 = pneg %p16
    $region19: #{tpu_custom_call.1} parent=1 // pred_check_branch
      %377 = sbr.rel (%p375) target = $region21
    $region20: #{tpu_custom_call.1} parent=1 // pred_region
      %v378 = vld [vmem:[#allocation2] sm:$0xff]
      %v379 = vld [vmem:[#allocation2 + $0x8] sm:$0xff]
      %v380 = vld [vmem:[#allocation2 + $0x10] sm:$0xff]
      %v381 = vld [vmem:[#allocation2 + $0x18] sm:$0xff]
      %v382 = vld [vmem:[#allocation2 + $0x20] sm:$0xff]
      %v383 = vld [vmem:[#allocation2 + $0x28] sm:$0xff]
      %v384 = vld [vmem:[#allocation2 + $0x30] sm:$0xff]
      %v385 = vld [vmem:[#allocation2 + $0x38] sm:$0xff]
      %v386 = vld [vmem:[#allocation2 + $0x40] sm:$0xff]
      %v387 = vld [vmem:[#allocation2 + $0x48] sm:$0xff]
      %v388 = vld [vmem:[#allocation2 + $0x50] sm:$0xff]
      %v389 = vld [vmem:[#allocation2 + $0x58] sm:$0xff]
      %v390 = vld [vmem:[#allocation2 + $0x60] sm:$0xff]
      %v391 = vld [vmem:[#allocation2 + $0x68] sm:$0xff]
      %v392 = vld [vmem:[#allocation2 + $0x70] sm:$0xff]
      %v393 = vld [vmem:[#allocation2 + $0x78] sm:$0xff]
      %v394 = vmax.f32 %v378, 0.0
      %v395 = vmax.f32 %v379, 0.0
      %v396 = vmax.f32 %v380, 0.0
      %v397 = vmax.f32 %v381, 0.0
      %v398 = vmax.f32 %v382, 0.0
      %v399 = vmax.f32 %v383, 0.0
      %v400 = vmax.f32 %v384, 0.0
      %v401 = vmax.f32 %v385, 0.0
      %v402 = vmax.f32 %v386, 0.0
      %v403 = vmax.f32 %v387, 0.0
      %v404 = vmax.f32 %v388, 0.0
      %v405 = vmax.f32 %v389, 0.0
      %v406 = vmax.f32 %v390, 0.0
      %v407 = vmax.f32 %v391, 0.0
      %v408 = vmax.f32 %v392, 0.0
      %v409 = vmax.f32 %v393, 0.0
      %410 = vst [vmem:[#allocation2] sm:$0xff] %v394
      %411 = vst [vmem:[#allocation2 + $0x8] sm:$0xff] %v395
      %412 = vst [vmem:[#allocation2 + $0x10] sm:$0xff] %v396
      %413 = vst [vmem:[#allocation2 + $0x18] sm:$0xff] %v397
      %414 = vst [vmem:[#allocation2 + $0x20] sm:$0xff] %v398
      %415 = vst [vmem:[#allocation2 + $0x28] sm:$0xff] %v399
      %416 = vst [vmem:[#allocation2 + $0x30] sm:$0xff] %v400
      %417 = vst [vmem:[#allocation2 + $0x38] sm:$0xff] %v401
      %418 = vst [vmem:[#allocation2 + $0x40] sm:$0xff] %v402
      %419 = vst [vmem:[#allocation2 + $0x48] sm:$0xff] %v403
      %420 = vst [vmem:[#allocation2 + $0x50] sm:$0xff] %v404
      %421 = vst [vmem:[#allocation2 + $0x58] sm:$0xff] %v405
      %422 = vst [vmem:[#allocation2 + $0x60] sm:$0xff] %v406
      %423 = vst [vmem:[#allocation2 + $0x68] sm:$0xff] %v407
      %424 = vst [vmem:[#allocation2 + $0x70] sm:$0xff] %v408
      %425 = vst [vmem:[#allocation2 + $0x78] sm:$0xff] %v409
    $region21: #{tpu_custom_call.1} parent=1 // pred_fallthru
      _
    // Predicated region
    $region22: #{tpu_custom_call.1} parent=1 // pred_check
      _
    $region23: #{tpu_custom_call.1} parent=1 // pred_check_branch
      %427 = sbr.rel (0) target = $region25
    $region24: #{tpu_custom_call.1} parent=1 // pred_region
      %s429 = ssub.s32 2048, 2048
      %430 = vsyncadd [#allocation3], %s429
      %s431 = sshll.u32 [#allocation2], 4
      %s432 = int_to_ptr.vmem [resolvable:$true] %s431
      %437 = dma.vmem_to_hbm [thread:$0]  %s432, 2048, %s3, [#allocation3], 128, 128, 8
    $region25: #{tpu_custom_call.1} parent=1 // pred_fallthru
      _
    // Predicated region
    $region26: #{tpu_custom_call.1} parent=1 // pred_check
      _
    $region27: #{tpu_custom_call.1} parent=1 // pred_check_branch
      %439 = sbr.rel (0) target = $region29
    $region28: #{tpu_custom_call.1} parent=1 // pred_region
      %440 = dma.done [#allocation3], 2048
    $region29: #{tpu_custom_call.1} parent=1 // pred_fallthru
      _
    %441 = vsyncpa [#allocation3], 1

</llo_original>
